<compile_context>
chip_gen: v5e
topology: v5e:2x2
jax: 0.10.0
libtpu: 0.0.40
codegen_flags: <defaults>
</compile_context>

<pallas_src>
import math
import jax
import jax.numpy as jnp
from jax.experimental import pallas as pl
from jax.experimental.pallas import tpu as pltpu

# ---- sizes (small, consistent with the module) ----
VOCAB = 100           # vocab_size (small synthetic)
VOCAB_PAD = 128       # vocab padded to a lane tile for the one-hot gather matmul
D = 32                # embedding_dim
H = D // 2            # hidden of classifier
C = 2                 # num_classes
B = 2                 # batch
L = 8                 # sequence length
BL = B * L
SUB_PAD = 8           # sublane padding for the pooled/logits rows
OUT_PAD = 128         # lane padding for the logits store
BN_EPS = 1e-5
LEAKY_SLOPE = 0.01
NEG_BIG = -1e9        # block-diagonal mask value (finite, avoids -inf - -inf)


def text_attention_kernel(ids_ref, embed_ref, win_ref, wom_ref, woq_ref,
                          mask_ref, pool_ref, w1_ref, b1_ref, w2_ref, b2_ref,
                          out_ref):
    """Single invocation: embedding gather + attention + pooling + classifier."""
    # --- embedding gather as a one-hot matmul (MXU is otherwise idle) ---
    ids = ids_ref[...]                                                # (BL, 1) int32
    iota = jax.lax.broadcasted_iota(jnp.int32, (BL, VOCAB_PAD), 1)    # (BL, V)
    onehot = jnp.where(iota == ids, 1.0, 0.0)                         # (BL, V) f32
    x = jnp.dot(onehot, embed_ref[...],
                preferred_element_type=jnp.float32)                   # (BL, D)

    # --- q projection for the whole batch in one MXU pass ---
    q = jnp.dot(x, win_ref[...], preferred_element_type=jnp.float32)  # (BL, D)

    # --- fused attention: one score matmul + block-diagonal mask + one mix ---
    scores = jax.lax.dot_general(
        q, x, (((1,), (1,)), ((), ())),
        preferred_element_type=jnp.float32)                           # (BL, BL)
    scores = scores + mask_ref[...]                                   # mask BEFORE max
    m = jnp.max(scores, axis=-1, keepdims=True)
    e = jnp.exp(scores - m)
    w = e / jnp.sum(e, axis=-1, keepdims=True)                        # exact divide
    mix = jnp.dot(w, x, preferred_element_type=jnp.float32)           # (BL, D)

    # --- cat([mix, q], -1) @ W_out without the lane concatenate ---
    attn_out = jnp.tanh(
        jnp.dot(mix, wom_ref[...], preferred_element_type=jnp.float32)
        + jnp.dot(q, woq_ref[...], preferred_element_type=jnp.float32))  # (BL, D)

    # --- mean over L as a pooling-matrix matmul (rows >= B are zero) ---
    pooled = jnp.dot(pool_ref[...], attn_out,
                     preferred_element_type=jnp.float32)              # (SUB_PAD, D)

    # --- classifier: Linear (+ folded eval BatchNorm) -> LeakyReLU -> Linear ---
    h = jnp.dot(pooled, w1_ref[...],
                preferred_element_type=jnp.float32) + b1_ref[...]     # (SUB_PAD, H)
    h = jnp.where(h >= 0, h, LEAKY_SLOPE * h)
    out_ref[...] = jnp.dot(h, w2_ref[...],
                           preferred_element_type=jnp.float32) + b2_ref[...]  # (SUB_PAD, OUT_PAD)


def init_params(key):
    ks = jax.random.split(key, 8)
    p = {}
    p["embed"] = jax.random.normal(ks[0], (VOCAB, D), jnp.float32)            # nn.Embedding
    p["win"] = jax.random.normal(ks[1], (D, D), jnp.float32) / math.sqrt(D)   # attn linear_in (in,out)
    p["wout"] = jax.random.normal(ks[2], (2 * D, D), jnp.float32) / math.sqrt(2 * D)  # attn linear_out
    p["w1"] = jax.random.normal(ks[3], (D, H), jnp.float32) / math.sqrt(D)    # classifier.hidden (in,out)
    p["b1"] = 0.01 * jax.random.normal(ks[4], (1, H), jnp.float32)
    p["gamma"] = jnp.ones((1, H), jnp.float32)                                # BatchNorm1d params
    p["beta"] = jnp.zeros((1, H), jnp.float32)
    p["rmean"] = jnp.zeros((1, H), jnp.float32)                               # running stats (eval)
    p["rvar"] = jnp.ones((1, H), jnp.float32)
    p["w2"] = jax.random.normal(ks[5], (H, C), jnp.float32) / math.sqrt(H)    # classifier.output
    p["b2"] = 0.01 * jax.random.normal(ks[6], (1, C), jnp.float32)
    return p


def fold_params(params):
    """One-time host-side folding/padding (hoisted out of the per-call path)."""
    f = {}
    # Embedding table padded to a lane-tile number of rows for the one-hot matmul.
    f["embed"] = jnp.pad(params["embed"], ((0, VOCAB_PAD - VOCAB), (0, 0)))
    f["win"] = params["win"]
    # Split W_out so the kernel avoids a lane-axis concatenate.
    f["wout_mix"] = params["wout"][:D]                                # (D, D)
    f["wout_q"] = params["wout"][D:]                                  # (D, D)
    # Block-diagonal additive mask for the fused (BL, BL) attention.
    blk = jnp.repeat(jnp.arange(B), L)                                # (BL,)
    f["mask"] = jnp.where(blk[:, None] == blk[None, :], 0.0,
                          NEG_BIG).astype(jnp.float32)                # (BL, BL)
    # Pooling matrix: mean over L per batch, padded to SUB_PAD rows.
    pool = jnp.zeros((SUB_PAD, BL), jnp.float32)
    for b in range(B):
        pool = pool.at[b, b * L:(b + 1) * L].set(1.0 / L)
    f["pool"] = pool
    # Fold BatchNorm1d(eval) into the hidden Linear.
    scale = params["gamma"] * jax.lax.rsqrt(params["rvar"] + BN_EPS)  # (1, H)
    f["w1"] = params["w1"] * scale                                    # (D, H)
    f["b1"] = (params["b1"] - params["rmean"]) * scale + params["beta"]  # (1, H)
    # Zero-pad the output projection to a lane-dense (SUB_PAD, OUT_PAD) store.
    f["w2"] = jnp.pad(params["w2"], ((0, 0), (0, OUT_PAD - C)))       # (H, OUT_PAD)
    f["b2"] = jnp.pad(params["b2"], ((0, 0), (0, OUT_PAD - C)))       # (1, OUT_PAD)
    return f


@jax.jit
def text_attention_forward(ids, f):
    ids2 = ids.reshape(BL, 1).astype(jnp.int32)
    vmem = pl.BlockSpec(memory_space=pltpu.MemorySpace.VMEM)
    out_pad = pl.pallas_call(
        text_attention_kernel,
        out_shape=jax.ShapeDtypeStruct((SUB_PAD, OUT_PAD), jnp.float32),
        in_specs=[vmem] * 11,
        out_specs=vmem,
    )(ids2, f["embed"], f["win"], f["wout_mix"], f["wout_q"], f["mask"],
      f["pool"], f["w1"], f["b1"], f["w2"], f["b2"])
    return out_pad[:B, :C]


def text_attention_reference(ids, params):
    """Pure-JAX reference of the same forward pass (for sanity check)."""
    x = jnp.take(params["embed"], ids, axis=0)                 # (B, L, D)
    q = jnp.einsum("bld,de->ble", x, params["win"])
    scores = jnp.einsum("bld,bmd->blm", q, x)
    w = jax.nn.softmax(scores, axis=-1)
    mix = jnp.einsum("blm,bmd->bld", w, x)
    out = jnp.tanh(jnp.concatenate([mix, q], axis=-1) @ params["wout"])
    pooled = jnp.mean(out, axis=1)                             # (B, D)
    h = pooled @ params["w1"] + params["b1"]
    h = params["gamma"] * (h - params["rmean"]) / jnp.sqrt(params["rvar"] + BN_EPS) \
        + params["beta"]
    h = jnp.where(h >= 0, h, LEAKY_SLOPE * h)
    return h @ params["w2"] + params["b2"]


if __name__ == "__main__":
    key = jax.random.PRNGKey(0)
    k_ids, k_par = jax.random.split(key)
    ids = jax.random.randint(k_ids, (B, L), 0, VOCAB, dtype=jnp.int32)
    params = init_params(k_par)
    folded = fold_params(params)   # one-time folding, hoisted off the call path

    out = jax.block_until_ready(text_attention_forward(ids, folded))
    ref = jax.block_until_ready(text_attention_reference(ids, params))

    assert out.shape == (B, C) and out.dtype == jnp.float32
    # Small tolerance for MXU f32-decomposition differences vs. the XLA reference
    # (the one-hot gather / score matmuls run on the MXU inside the kernel).
    assert jnp.allclose(out, ref, atol=2e-3, rtol=2e-3), (out, ref)
    print("KERNEL_OK")
</pallas_src>

<mosaic_0001>
module attributes {stable_mosaic.version = 11 : i64} {
  func.func @text_attention_kernel(%arg0: memref<16x1xi32, #tpu.memory_space<vmem>>, %arg1: memref<128x32xf32, #tpu.memory_space<vmem>>, %arg2: memref<32x32xf32, #tpu.memory_space<vmem>>, %arg3: memref<32x32xf32, #tpu.memory_space<vmem>>, %arg4: memref<32x32xf32, #tpu.memory_space<vmem>>, %arg5: memref<16x16xf32, #tpu.memory_space<vmem>>, %arg6: memref<8x16xf32, #tpu.memory_space<vmem>>, %arg7: memref<32x16xf32, #tpu.memory_space<vmem>>, %arg8: memref<1x16xf32, #tpu.memory_space<vmem>>, %arg9: memref<16x128xf32, #tpu.memory_space<vmem>>, %arg10: memref<1x128xf32, #tpu.memory_space<vmem>>, %arg11: memref<8x128xf32, #tpu.memory_space<vmem>>) attributes {dimension_semantics = [], scalar_prefetch = 0 : i64, scratch_operands = 0 : i64, tpu.core_type = #tpu.core_type<tc>} {
    %c0 = arith.constant 0 : index
    %c0_0 = arith.constant 0 : index
    %0 = vector.load %arg0[%c0, %c0_0] : memref<16x1xi32, #tpu.memory_space<vmem>>, vector<16x1xi32>
    %1 = tpu.iota {dimensions = array<i32: 1>} : vector<16x128xi32>
    %2 = vector.broadcast %0 : vector<16x1xi32> to vector<16x128xi32>
    %3 = arith.cmpi eq, %1, %2 : vector<16x128xi32>
    %cst = arith.constant 1.000000e+00 : f32
    %cst_1 = arith.constant 0.000000e+00 : f32
    %4 = vector.broadcast %cst : f32 to vector<16x128xf32>
    %5 = vector.broadcast %cst_1 : f32 to vector<16x128xf32>
    %6 = arith.select %3, %4, %5 : vector<16x128xi1>, vector<16x128xf32>
    %c0_2 = arith.constant 0 : index
    %c0_3 = arith.constant 0 : index
    %7 = vector.load %arg1[%c0_2, %c0_3] : memref<128x32xf32, #tpu.memory_space<vmem>>, vector<128x32xf32>
    %cst_4 = arith.constant dense<0.000000e+00> : vector<16x32xf32>
    %8 = tpu.matmul %6, %7, %cst_4 {dimension_numbers = #tpu.dot_dimension_numbers<[1], [0], [0], [1], [0, 0, 1, 1], [], []>} : vector<16x128xf32>, vector<128x32xf32>, vector<16x32xf32> -> vector<16x32xf32>
    %c0_5 = arith.constant 0 : index
    %c0_6 = arith.constant 0 : index
    %9 = vector.load %arg2[%c0_5, %c0_6] : memref<32x32xf32, #tpu.memory_space<vmem>>, vector<32x32xf32>
    %cst_7 = arith.constant dense<0.000000e+00> : vector<16x32xf32>
    %10 = tpu.matmul %8, %9, %cst_7 {dimension_numbers = #tpu.dot_dimension_numbers<[1], [0], [0], [1], [0, 0, 1, 1], [], []>} : vector<16x32xf32>, vector<32x32xf32>, vector<16x32xf32> -> vector<16x32xf32>
    %cst_8 = arith.constant dense<0.000000e+00> : vector<16x16xf32>
    %11 = tpu.matmul %10, %8, %cst_8 {dimension_numbers = #tpu.dot_dimension_numbers<[1], [1], [0], [0], [0, 0, 1, 0], [], []>} : vector<16x32xf32>, vector<16x32xf32>, vector<16x16xf32> -> vector<16x16xf32>
    %c0_9 = arith.constant 0 : index
    %c0_10 = arith.constant 0 : index
    %12 = vector.load %arg5[%c0_9, %c0_10] : memref<16x16xf32, #tpu.memory_space<vmem>>, vector<16x16xf32>
    %13 = arith.addf %11, %12 : vector<16x16xf32>
    %cst_11 = arith.constant dense<0xFF800000> : vector<16xf32>
    %14 = vector.multi_reduction <maximumf>, %13, %cst_11 [1] : vector<16x16xf32> to vector<16xf32>
    %15 = vector.shape_cast %14 : vector<16xf32> to vector<16x1xf32>
    %16 = vector.broadcast %15 : vector<16x1xf32> to vector<16x16xf32>
    %17 = arith.subf %13, %16 : vector<16x16xf32>
    %18 = math.exp %17 : vector<16x16xf32>
    %cst_12 = arith.constant dense<0.000000e+00> : vector<16xf32>
    %19 = vector.multi_reduction <add>, %18, %cst_12 [1] : vector<16x16xf32> to vector<16xf32>
    %20 = vector.shape_cast %19 : vector<16xf32> to vector<16x1xf32>
    %21 = vector.broadcast %20 : vector<16x1xf32> to vector<16x16xf32>
    %22 = arith.divf %18, %21 : vector<16x16xf32>
    %cst_13 = arith.constant dense<0.000000e+00> : vector<16x32xf32>
    %23 = tpu.matmul %22, %8, %cst_13 {dimension_numbers = #tpu.dot_dimension_numbers<[1], [0], [0], [1], [0, 0, 1, 1], [], []>} : vector<16x16xf32>, vector<16x32xf32>, vector<16x32xf32> -> vector<16x32xf32>
    %c0_14 = arith.constant 0 : index
    %c0_15 = arith.constant 0 : index
    %24 = vector.load %arg3[%c0_14, %c0_15] : memref<32x32xf32, #tpu.memory_space<vmem>>, vector<32x32xf32>
    %cst_16 = arith.constant dense<0.000000e+00> : vector<16x32xf32>
    %25 = tpu.matmul %23, %24, %cst_16 {dimension_numbers = #tpu.dot_dimension_numbers<[1], [0], [0], [1], [0, 0, 1, 1], [], []>} : vector<16x32xf32>, vector<32x32xf32>, vector<16x32xf32> -> vector<16x32xf32>
    %c0_17 = arith.constant 0 : index
    %c0_18 = arith.constant 0 : index
    %26 = vector.load %arg4[%c0_17, %c0_18] : memref<32x32xf32, #tpu.memory_space<vmem>>, vector<32x32xf32>
    %cst_19 = arith.constant dense<0.000000e+00> : vector<16x32xf32>
    %27 = tpu.matmul %10, %26, %cst_19 {dimension_numbers = #tpu.dot_dimension_numbers<[1], [0], [0], [1], [0, 0, 1, 1], [], []>} : vector<16x32xf32>, vector<32x32xf32>, vector<16x32xf32> -> vector<16x32xf32>
    %28 = arith.addf %25, %27 : vector<16x32xf32>
    %29 = math.tanh %28 : vector<16x32xf32>
    %c0_20 = arith.constant 0 : index
    %c0_21 = arith.constant 0 : index
    %30 = vector.load %arg6[%c0_20, %c0_21] : memref<8x16xf32, #tpu.memory_space<vmem>>, vector<8x16xf32>
    %cst_22 = arith.constant dense<0.000000e+00> : vector<8x32xf32>
    %31 = tpu.matmul %30, %29, %cst_22 {dimension_numbers = #tpu.dot_dimension_numbers<[1], [0], [0], [1], [0, 0, 1, 1], [], []>} : vector<8x16xf32>, vector<16x32xf32>, vector<8x32xf32> -> vector<8x32xf32>
    %c0_23 = arith.constant 0 : index
    %c0_24 = arith.constant 0 : index
    %32 = vector.load %arg7[%c0_23, %c0_24] : memref<32x16xf32, #tpu.memory_space<vmem>>, vector<32x16xf32>
    %cst_25 = arith.constant dense<0.000000e+00> : vector<8x16xf32>
    %33 = tpu.matmul %31, %32, %cst_25 {dimension_numbers = #tpu.dot_dimension_numbers<[1], [0], [0], [1], [0, 0, 1, 1], [], []>} : vector<8x32xf32>, vector<32x16xf32>, vector<8x16xf32> -> vector<8x16xf32>
    %c0_26 = arith.constant 0 : index
    %c0_27 = arith.constant 0 : index
    %34 = vector.load %arg8[%c0_26, %c0_27] : memref<1x16xf32, #tpu.memory_space<vmem>>, vector<1x16xf32>
    %35 = vector.broadcast %34 : vector<1x16xf32> to vector<8x16xf32>
    %36 = arith.addf %33, %35 : vector<8x16xf32>
    %cst_28 = arith.constant 0.000000e+00 : f32
    %37 = vector.broadcast %cst_28 : f32 to vector<8x16xf32>
    %38 = arith.cmpf oge, %36, %37 : vector<8x16xf32>
    %cst_29 = arith.constant 0.00999999977 : f32
    %39 = vector.broadcast %cst_29 : f32 to vector<8x16xf32>
    %40 = arith.mulf %39, %36 : vector<8x16xf32>
    %41 = arith.select %38, %36, %40 : vector<8x16xi1>, vector<8x16xf32>
    %c0_30 = arith.constant 0 : index
    %c0_31 = arith.constant 0 : index
    %42 = vector.load %arg9[%c0_30, %c0_31] : memref<16x128xf32, #tpu.memory_space<vmem>>, vector<16x128xf32>
    %cst_32 = arith.constant dense<0.000000e+00> : vector<8x128xf32>
    %43 = tpu.matmul %41, %42, %cst_32 {dimension_numbers = #tpu.dot_dimension_numbers<[1], [0], [0], [1], [0, 0, 1, 1], [], []>} : vector<8x16xf32>, vector<16x128xf32>, vector<8x128xf32> -> vector<8x128xf32>
    %c0_33 = arith.constant 0 : index
    %c0_34 = arith.constant 0 : index
    %44 = vector.load %arg10[%c0_33, %c0_34] : memref<1x128xf32, #tpu.memory_space<vmem>>, vector<1x128xf32>
    %45 = vector.broadcast %44 : vector<1x128xf32> to vector<8x128xf32>
    %46 = arith.addf %43, %45 : vector<8x128xf32>
    %c0_35 = arith.constant 0 : index
    %c0_36 = arith.constant 0 : index
    %47 = vector.load %arg11[%c0_35, %c0_36] : memref<8x128xf32, #tpu.memory_space<vmem>>, vector<8x128xf32>
    tpu.vector_store %arg11[%c0_35, %c0_36], %46 {strides = array<i32>} : memref<8x128xf32, #tpu.memory_space<vmem>>, vector<8x128xf32>,
    return
  }
}

</mosaic_0001>

<llo_original>
// kernel: text_attention_forward.1
$region0: #{text_attention_forward.1}
  #allocation0 [shape = 'u32[]', space=smem, size = 0x4, offset = 0x4, fixed_abs, tag = 'smem constant byte address 0x4 - core index']
  #allocation1 [shape = 'u32[72,128]{1,0:T(1,128)}', space=vmem, size = 0x9000, scoped, tag = 'internal scratch']
  %s0 = inlined_call_operand.vmem [shape: s32[16,1], index: 0, kind: input, shape index: {}]
  %s1 = inlined_call_operand.vmem [shape: f32[128,32], index: 1, kind: input, shape index: {}]
  %s2 = inlined_call_operand.vmem [shape: f32[32,32], index: 2, kind: input, shape index: {}]
  %s3 = inlined_call_operand.vmem [shape: f32[32,32], index: 3, kind: input, shape index: {}]
  %s4 = inlined_call_operand.vmem [shape: f32[32,32], index: 4, kind: input, shape index: {}]
  %s5 = inlined_call_operand.vmem [shape: f32[16,16], index: 5, kind: input, shape index: {}]
  %s6 = inlined_call_operand.vmem [shape: f32[8,16], index: 6, kind: input, shape index: {}]
  %s7 = inlined_call_operand.vmem [shape: f32[32,16], index: 7, kind: input, shape index: {}]
  %s8 = inlined_call_operand.vmem [shape: f32[1,16], index: 8, kind: input, shape index: {}]
  %s9 = inlined_call_operand.vmem [shape: f32[16,128], index: 9, kind: input, shape index: {}]
  %s10 = inlined_call_operand.vmem [shape: f32[1,128], index: 10, kind: input, shape index: {}]
  %s11 = inlined_call_operand.vmem [shape: f32[8,128], index: 11, kind: output, shape index: {}]
  %s12 = sld [smem:[#allocation0]]
  $region54: #{text_attention_forward.1} parent=0
    _
  %s14 = ssub.s32 1, %s12
  %s15 = scalar_select 0, %s14, %s12
  // Predicated region
  $region2: #{text_attention_forward.1} parent=0 // pred_check
    _
  $region3: #{text_attention_forward.1} parent=0 // pred_check_branch
    %17 = sbr.rel (0) target = $region5
  $region4: #{text_attention_forward.1} parent=0 // pred_region
    _
  $region5: #{text_attention_forward.1} parent=0 // pred_fallthru
    _
  // Predicated region
  $region6: #{text_attention_forward.1} parent=0 // pred_check
    _
  $region7: #{text_attention_forward.1} parent=0 // pred_check_branch
    %19 = sbr.rel (0) target = $region9
  $region8: #{text_attention_forward.1} parent=0 // pred_region
    _
  $region9: #{text_attention_forward.1} parent=0 // pred_fallthru
    _
  // Predicated region
  $region10: #{text_attention_forward.1} parent=0 // pred_check
    _
  $region11: #{text_attention_forward.1} parent=0 // pred_check_branch
    %21 = sbr.rel (0) target = $region13
  $region12: #{text_attention_forward.1} parent=0 // pred_region
    _
  $region13: #{text_attention_forward.1} parent=0 // pred_fallthru
    _
  // Predicated region
  $region14: #{text_attention_forward.1} parent=0 // pred_check
    _
  $region15: #{text_attention_forward.1} parent=0 // pred_check_branch
    %23 = sbr.rel (0) target = $region17
  $region16: #{text_attention_forward.1} parent=0 // pred_region
    _
  $region17: #{text_attention_forward.1} parent=0 // pred_fallthru
    _
  // Predicated region
  $region18: #{text_attention_forward.1} parent=0 // pred_check
    _
  $region19: #{text_attention_forward.1} parent=0 // pred_check_branch
    %25 = sbr.rel (0) target = $region21
  $region20: #{text_attention_forward.1} parent=0 // pred_region
    _
  $region21: #{text_attention_forward.1} parent=0 // pred_fallthru
    _
  // Predicated region
  $region22: #{text_attention_forward.1} parent=0 // pred_check
    _
  $region23: #{text_attention_forward.1} parent=0 // pred_check_branch
    %27 = sbr.rel (0) target = $region25
  $region24: #{text_attention_forward.1} parent=0 // pred_region
    _
  $region25: #{text_attention_forward.1} parent=0 // pred_fallthru
    _
  // Predicated region
  $region26: #{text_attention_forward.1} parent=0 // pred_check
    _
  $region27: #{text_attention_forward.1} parent=0 // pred_check_branch
    %29 = sbr.rel (0) target = $region29
  $region28: #{text_attention_forward.1} parent=0 // pred_region
    _
  $region29: #{text_attention_forward.1} parent=0 // pred_fallthru
    _
  // Predicated region
  $region30: #{text_attention_forward.1} parent=0 // pred_check
    _
  $region31: #{text_attention_forward.1} parent=0 // pred_check_branch
    %31 = sbr.rel (0) target = $region33
  $region32: #{text_attention_forward.1} parent=0 // pred_region
    _
  $region33: #{text_attention_forward.1} parent=0 // pred_fallthru
    _
  // Predicated region
  $region34: #{text_attention_forward.1} parent=0 // pred_check
    _
  $region35: #{text_attention_forward.1} parent=0 // pred_check_branch
    %33 = sbr.rel (0) target = $region37
  $region36: #{text_attention_forward.1} parent=0 // pred_region
    _
  $region37: #{text_attention_forward.1} parent=0 // pred_fallthru
    _
  // Predicated region
  $region38: #{text_attention_forward.1} parent=0 // pred_check
    _
  $region39: #{text_attention_forward.1} parent=0 // pred_check_branch
    %35 = sbr.rel (0) target = $region41
  $region40: #{text_attention_forward.1} parent=0 // pred_region
    _
  $region41: #{text_attention_forward.1} parent=0 // pred_fallthru
    _
  // Predicated region
  $region42: #{text_attention_forward.1} parent=0 // pred_check
    _
  $region43: #{text_attention_forward.1} parent=0 // pred_check_branch
    %37 = sbr.rel (0) target = $region45
  $region44: #{text_attention_forward.1} parent=0 // pred_region
    _
  $region45: #{text_attention_forward.1} parent=0 // pred_fallthru
    _
  %v38 = vld [vmem:[%s0] sm:$0xff]
  %v39 = vld [vmem:[%s0 + $0x8] sm:$0xff]
  %v40 = vlaneseq
  %v41 = vand.u32 %v40, 127
  %42 = vset.pattern.permute.xlu0 0
  %43 = vperm.xlu0 %42, %v38
  %v44 = vpop.permute.xlu0 %43
  %45 = vset.pattern.permute.xlu0 0
  %46 = vperm.xlu0 %45, %v39
  %v47 = vpop.permute.xlu0 %46
  %vm48 = vcmp.eq.s32.totalorder %v41, %v44
  %vm49 = vcmp.eq.s32.totalorder %v41, %v47
  %v50 = vsel %vm48, 1.0, 0.0
  %v51 = vsel %vm49, 1.0, 0.0
  %v52 = vld [vmem:[%s1] sm:$0xff]
  %v53 = vld [vmem:[%s1 + $0x8] sm:$0xff]
  %v54 = vld [vmem:[%s1 + $0x10] sm:$0xff]
  %v55 = vld [vmem:[%s1 + $0x18] sm:$0xff]
  %v56 = vld [vmem:[%s1 + $0x20] sm:$0xff]
  %v57 = vld [vmem:[%s1 + $0x28] sm:$0xff]
  %v58 = vld [vmem:[%s1 + $0x30] sm:$0xff]
  %v59 = vld [vmem:[%s1 + $0x38] sm:$0xff]
  %v60 = vld [vmem:[%s1 + $0x40] sm:$0xff]
  %v61 = vld [vmem:[%s1 + $0x48] sm:$0xff]
  %v62 = vld [vmem:[%s1 + $0x50] sm:$0xff]
  %v63 = vld [vmem:[%s1 + $0x58] sm:$0xff]
  %v64 = vld [vmem:[%s1 + $0x60] sm:$0xff]
  %v65 = vld [vmem:[%s1 + $0x68] sm:$0xff]
  %v66 = vld [vmem:[%s1 + $0x70] sm:$0xff]
  %v67 = vld [vmem:[%s1 + $0x78] sm:$0xff]
  %68 = vmatpush.msra.mxu0 %v67
  %69 = vmatpush.msra.mxu0 %v66
  %70 = vmatpush.msra.mxu0 %v65
  %71 = vmatpush.msra.mxu0 %v64
  %72 = vmatpush.msra.mxu0 %v63
  %73 = vmatpush.msra.mxu0 %v62
  %74 = vmatpush.msra.mxu0 %v61
  %75 = vmatpush.msra.mxu0 %v60
  %76 = vmatpush.msra.mxu0 %v59
  %77 = vmatpush.msra.mxu0 %v58
  %78 = vmatpush.msra.mxu0 %v57
  %79 = vmatpush.msra.mxu0 %v56
  %80 = vmatpush.msra.mxu0 %v55
  %81 = vmatpush.msra.mxu0 %v54
  %82 = vmatpush.msra.mxu0 %v53
  %83 = vmatpush.msra.mxu0 %v52
  %84 = vmatmul.f32.gmra.mxu0 %v50
  %v85 = vpop.f32.mrf.mxu0
  %v86 = vadd.f32 0.0, %v85
  %87 = vmatmul.f32.gmra.mxu0 %v51
  %v88 = vpop.f32.mrf.mxu0
  %v89 = vadd.f32 0.0, %v88
  %90 = vdwg.mxu0
  %v91 = vld [vmem:[%s2] sm:$0xff]
  %v92 = vld [vmem:[%s2 + $0x8] sm:$0xff]
  %v93 = vld [vmem:[%s2 + $0x10] sm:$0xff]
  %v94 = vld [vmem:[%s2 + $0x18] sm:$0xff]
  %vm95 = vcmask 261120
  %v97 = vsel %vm95, %v86, 0
  %v100 = vsel %vm95, %v89, 0
  %102 = vmatpush.msra.mxu0 0.0
  %103 = vmatpush.msra.mxu0 0.0
  %104 = vmatpush.msra.mxu0 0.0
  %105 = vmatpush.msra.mxu0 0.0
  %106 = vmatpush.msra.mxu0 0.0
  %107 = vmatpush.msra.mxu0 0.0
  %108 = vmatpush.msra.mxu0 0.0
  %109 = vmatpush.msra.mxu0 0.0
  %110 = vmatpush.msra.mxu0 0.0
  %111 = vmatpush.msra.mxu0 0.0
  %112 = vmatpush.msra.mxu0 0.0
  %113 = vmatpush.msra.mxu0 0.0
  %114 = vmatpush.msra.mxu0 %v94
  %115 = vmatpush.msra.mxu0 %v93
  %116 = vmatpush.msra.mxu0 %v92
  %117 = vmatpush.msra.mxu0 %v91
  %118 = vmatmul.f32.gmra.mxu0 %v97
  %v119 = vpop.f32.mrf.mxu0
  %v120 = vadd.f32 0.0, %v119
  %121 = vmatmul.f32.gmra.mxu0 %v100
  %v122 = vpop.f32.mrf.mxu0
  %v123 = vadd.f32 0.0, %v122
  %124 = vdwg.mxu0
  %v125 = vld [vmem:[%s5] sm:$0xff]
  %v126 = vld [vmem:[%s5 + $0x8] sm:$0xff]
  %v128 = vsel %vm95, %v120, 0
  %v131 = vsel %vm95, %v123, 0
  %133 = vmatpush.xpose.msra.mxu0 0.0
  %134 = vmatpush.xpose.msra.mxu0 0.0
  %135 = vmatpush.xpose.msra.mxu0 0.0
  %136 = vmatpush.xpose.msra.mxu0 0.0
  %137 = vmatpush.xpose.msra.mxu0 0.0
  %138 = vmatpush.xpose.msra.mxu0 0.0
  %139 = vmatpush.xpose.msra.mxu0 0.0
  %140 = vmatpush.xpose.msra.mxu0 0.0
  %141 = vmatpush.xpose.msra.mxu0 0.0
  %142 = vmatpush.xpose.msra.mxu0 0.0
  %143 = vmatpush.xpose.msra.mxu0 0.0
  %144 = vmatpush.xpose.msra.mxu0 0.0
  %145 = vmatpush.xpose.msra.mxu0 0.0
  %146 = vmatpush.xpose.msra.mxu0 0.0
  %147 = vmatpush.xpose.msra.mxu0 %v100
  %148 = vmatpush.xpose.msra.mxu0 %v97
  %149 = vmatmul.f32.gmra.mxu0 %v128
  %v150 = vpop.f32.mrf.mxu0
  %v151 = vadd.f32 %v125, %v150
  %152 = vmatmul.f32.gmra.mxu0 %v131
  %v153 = vpop.f32.mrf.mxu0
  %v154 = vadd.f32 %v126, %v153
  %155 = vdwg.mxu0
  %vm156 = vcmask 130048
  %v157 = vsel %vm156, %v151, -inf
  %158 = vmax.xlane.f32.xlu0 %v157
  %v159 = vpop.xlane.xlu0 %158
  %v160 = vsel %vm156, %v154, -inf
  %161 = vmax.xlane.f32.xlu0 %v160
  %v162 = vpop.xlane.xlu0 %161
  %v163 = vsub.f32 %v151, %v159
  %v164 = vsub.f32 %v154, %v162
  %v165 = vmul.f32 %v163, 1.442695
  %v166 = vpow.pop %v165
  %v167 = vmul.f32 %v164, 1.442695
  %v168 = vpow.pop %v167
  %v169 = vsel %vm156, %v166, 0.0
  %170 = vadd.xlane.f32.xlu0 %v169
  %v171 = vpop.xlane.xlu0 %170
  %v172 = vsel %vm156, %v168, 0.0
  %173 = vadd.xlane.f32.xlu0 %v172
  %v174 = vpop.xlane.xlu0 %173
  %v175 = vrcp.pop %v171
  %v176 = vmul.f32 %v171, %v175
  %v177 = vsub.f32 1.0, %v176
  %v178 = vmul.f32 %v175, %v177
  %v179 = vadd.f32 %v175, %v178
  %vm180 = vweird.f32 %v171
  %vm181 = vweird.f32 %v175
  %vm182 = vmor %vm180, %vm181
  %v183 = vsel %vm182, %v175, %v179
  %v184 = vand.u32 2147483647, %v171
  %vm185 = vcmp.eq.f32.partialorder %v184, 8.507059e+37
  %v186 = vand.u32 %v171, 2147483648
  %v187 = vor.u32 1.1754944e-38, %v186
  %v188 = vsel %vm185, %v187, %v183
  %v189 = vmul.f32 %v166, %v188
  %v190 = vrcp.pop %v174
  %v191 = vmul.f32 %v174, %v190
  %v192 = vsub.f32 1.0, %v191
  %v193 = vmul.f32 %v190, %v192
  %v194 = vadd.f32 %v190, %v193
  %vm195 = vweird.f32 %v174
  %vm196 = vweird.f32 %v190
  %vm197 = vmor %vm195, %vm196
  %v198 = vsel %vm197, %v190, %v194
  %v199 = vand.u32 2147483647, %v174
  %vm200 = vcmp.eq.f32.partialorder %v199, 8.507059e+37
  %v201 = vand.u32 %v174, 2147483648
  %v202 = vor.u32 1.1754944e-38, %v201
  %v203 = vsel %vm200, %v202, %v198
  %v204 = vmul.f32 %v168, %v203
  %v206 = vsel %vm156, %v189, 0
  %v209 = vsel %vm156, %v204, 0
  %211 = vmatpush.msra.mxu0 0.0
  %212 = vmatpush.msra.mxu0 0.0
  %213 = vmatpush.msra.mxu0 0.0
  %214 = vmatpush.msra.mxu0 0.0
  %215 = vmatpush.msra.mxu0 0.0
  %216 = vmatpush.msra.mxu0 0.0
  %217 = vmatpush.msra.mxu0 0.0
  %218 = vmatpush.msra.mxu0 0.0
  %219 = vmatpush.msra.mxu0 0.0
  %220 = vmatpush.msra.mxu0 0.0
  %221 = vmatpush.msra.mxu0 0.0
  %222 = vmatpush.msra.mxu0 0.0
  %223 = vmatpush.msra.mxu0 0.0
  %224 = vmatpush.msra.mxu0 0.0
  %225 = vmatpush.msra.mxu0 %v89
  %226 = vmatpush.msra.mxu0 %v86
  %227 = vmatmul.f32.gmra.mxu0 %v206
  %v228 = vpop.f32.mrf.mxu0
  %v229 = vadd.f32 0.0, %v228
  %230 = vmatmul.f32.gmra.mxu0 %v209
  %v231 = vpop.f32.mrf.mxu0
  %v232 = vadd.f32 0.0, %v231
  %233 = vdwg.mxu0
  %v234 = vld [vmem:[%s3] sm:$0xff]
  %v235 = vld [vmem:[%s3 + $0x8] sm:$0xff]
  %v236 = vld [vmem:[%s3 + $0x10] sm:$0xff]
  %v237 = vld [vmem:[%s3 + $0x18] sm:$0xff]
  %v238 = vld [vmem:[%s4] sm:$0xff]
  %v239 = vld [vmem:[%s4 + $0x8] sm:$0xff]
  %v240 = vld [vmem:[%s4 + $0x10] sm:$0xff]
  %v241 = vld [vmem:[%s4 + $0x18] sm:$0xff]
  %242 = vmatpush.msra.mxu0 0.0
  %243 = vmatpush.msra.mxu0 0.0
  %244 = vmatpush.msra.mxu0 0.0
  %245 = vmatpush.msra.mxu0 0.0
  %246 = vmatpush.msra.mxu0 0.0
  %247 = vmatpush.msra.mxu0 0.0
  %248 = vmatpush.msra.mxu0 0.0
  %249 = vmatpush.msra.mxu0 0.0
  %250 = vmatpush.msra.mxu0 0.0
  %251 = vmatpush.msra.mxu0 0.0
  %252 = vmatpush.msra.mxu0 0.0
  %253 = vmatpush.msra.mxu0 0.0
  %254 = vmatpush.msra.mxu0 %v241
  %255 = vmatpush.msra.mxu0 %v240
  %256 = vmatpush.msra.mxu0 %v239
  %257 = vmatpush.msra.mxu0 %v238
  %258 = vmatmul.f32.gmra.mxu0 %v128
  %v259 = vpop.f32.mrf.mxu0
  %v260 = vadd.f32 0.0, %v259
  %261 = vmatmul.f32.gmra.mxu0 %v131
  %v262 = vpop.f32.mrf.mxu0
  %v263 = vadd.f32 0.0, %v262
  %264 = vdwg.mxu0
  %v266 = vsel %vm95, %v229, 0
  %v269 = vsel %vm95, %v232, 0
  %271 = vmatpush.msra.mxu0 0.0
  %272 = vmatpush.msra.mxu0 0.0
  %273 = vmatpush.msra.mxu0 0.0
  %274 = vmatpush.msra.mxu0 0.0
  %275 = vmatpush.msra.mxu0 0.0
  %276 = vmatpush.msra.mxu0 0.0
  %277 = vmatpush.msra.mxu0 0.0
  %278 = vmatpush.msra.mxu0 0.0
  %279 = vmatpush.msra.mxu0 0.0
  %280 = vmatpush.msra.mxu0 0.0
  %281 = vmatpush.msra.mxu0 0.0
  %282 = vmatpush.msra.mxu0 0.0
  %283 = vmatpush.msra.mxu0 %v237
  %284 = vmatpush.msra.mxu0 %v236
  %285 = vmatpush.msra.mxu0 %v235
  %286 = vmatpush.msra.mxu0 %v234
  %287 = vmatmul.f32.gmra.mxu0 %v266
  %v288 = vpop.f32.mrf.mxu0
  %v289 = vadd.f32 %v260, %v288
  %290 = vmatmul.f32.gmra.mxu0 %v269
  %v291 = vpop.f32.mrf.mxu0
  %v292 = vadd.f32 %v263, %v291
  %293 = vdwg.mxu0
  %v294 = vtanh.pop %v289
  %v295 = vtanh.pop %v292
  %v296 = vld [vmem:[%s6] sm:$0xff]
  %v298 = vsel %vm156, %v296, 0
  %300 = vmatpush.msra.mxu0 0.0
  %301 = vmatpush.msra.mxu0 0.0
  %302 = vmatpush.msra.mxu0 0.0
  %303 = vmatpush.msra.mxu0 0.0
  %304 = vmatpush.msra.mxu0 0.0
  %305 = vmatpush.msra.mxu0 0.0
  %306 = vmatpush.msra.mxu0 0.0
  %307 = vmatpush.msra.mxu0 0.0
  %308 = vmatpush.msra.mxu0 0.0
  %309 = vmatpush.msra.mxu0 0.0
  %310 = vmatpush.msra.mxu0 0.0
  %311 = vmatpush.msra.mxu0 0.0
  %312 = vmatpush.msra.mxu0 0.0
  %313 = vmatpush.msra.mxu0 0.0
  %314 = vmatpush.msra.mxu0 %v295
  %315 = vmatpush.msra.mxu0 %v294
  %316 = vmatmul.f32.gmra.mxu0 %v298
  %v317 = vpop.f32.mrf.mxu0
  %v318 = vadd.f32 0.0, %v317
  %319 = vdwg.mxu0
  %v320 = vld [vmem:[%s7] sm:$0xff]
  %v321 = vld [vmem:[%s7 + $0x8] sm:$0xff]
  %v322 = vld [vmem:[%s7 + $0x10] sm:$0xff]
  %v323 = vld [vmem:[%s7 + $0x18] sm:$0xff]
  %v324 = vld [vmem:[%s8] sm:$0x1]
  %v326 = vperm.slane %v324, 0
  %v329 = vsel %vm95, %v318, 0
  %331 = vmatpush.msra.mxu0 0.0
  %332 = vmatpush.msra.mxu0 0.0
  %333 = vmatpush.msra.mxu0 0.0
  %334 = vmatpush.msra.mxu0 0.0
  %335 = vmatpush.msra.mxu0 0.0
  %336 = vmatpush.msra.mxu0 0.0
  %337 = vmatpush.msra.mxu0 0.0
  %338 = vmatpush.msra.mxu0 0.0
  %339 = vmatpush.msra.mxu0 0.0
  %340 = vmatpush.msra.mxu0 0.0
  %341 = vmatpush.msra.mxu0 0.0
  %342 = vmatpush.msra.mxu0 0.0
  %343 = vmatpush.msra.mxu0 %v323
  %344 = vmatpush.msra.mxu0 %v322
  %345 = vmatpush.msra.mxu0 %v321
  %346 = vmatpush.msra.mxu0 %v320
  %347 = vmatmul.f32.gmra.mxu0 %v329
  %v348 = vpop.f32.mrf.mxu0
  %v349 = vadd.f32 %v326, %v348
  %350 = vdwg.mxu0
  %vm351 = vcmp.ge.f32.partialorder %v349, 0.0
  %v352 = vmul.f32 %v349, 0.01
  %v353 = vsel %vm351, %v349, %v352
  %v354 = vld [vmem:[%s9] sm:$0xff]
  %v355 = vld [vmem:[%s9 + $0x8] sm:$0xff]
  %v356 = vld [vmem:[%s10] sm:$0x1]
  %v358 = vperm.slane %v356, 0
  %v361 = vsel %vm156, %v353, 0
  %363 = vmatpush.msra.mxu0 0.0
  %364 = vmatpush.msra.mxu0 0.0
  %365 = vmatpush.msra.mxu0 0.0
  %366 = vmatpush.msra.mxu0 0.0
  %367 = vmatpush.msra.mxu0 0.0
  %368 = vmatpush.msra.mxu0 0.0
  %369 = vmatpush.msra.mxu0 0.0
  %370 = vmatpush.msra.mxu0 0.0
  %371 = vmatpush.msra.mxu0 0.0
  %372 = vmatpush.msra.mxu0 0.0
  %373 = vmatpush.msra.mxu0 0.0
  %374 = vmatpush.msra.mxu0 0.0
  %375 = vmatpush.msra.mxu0 0.0
  %376 = vmatpush.msra.mxu0 0.0
  %377 = vmatpush.msra.mxu0 %v355
  %378 = vmatpush.msra.mxu0 %v354
  %379 = vmatmul.f32.gmra.mxu0 %v361
  %v380 = vpop.f32.mrf.mxu0
  %v381 = vadd.f32 %v358, %v380
  %382 = vdwg.mxu0
  %383 = vst [vmem:[%s11] sm:$0xff] %v381
  // Predicated region
  $region46: #{text_attention_forward.1} parent=0 // pred_check
    _
  $region47: #{text_attention_forward.1} parent=0 // pred_check_branch
    %385 = sbr.rel (0) target = $region49
  $region48: #{text_attention_forward.1} parent=0 // pred_region
    _
  $region49: #{text_attention_forward.1} parent=0 // pred_fallthru
    _
  // Predicated region
  $region50: #{text_attention_forward.1} parent=0 // pred_check
    _
  $region51: #{text_attention_forward.1} parent=0 // pred_check_branch
    %387 = sbr.rel (0) target = $region53
  $region52: #{text_attention_forward.1} parent=0 // pred_region
    _
  $region53: #{text_attention_forward.1} parent=0 // pred_fallthru
    _

</llo_original>
